<compile_context>
chip_gen: v6e
topology: v6e:2x2x1
jax: 0.10.0
libtpu: 0.0.40
codegen_flags: <defaults>
</compile_context>

<pallas_src>
import functools

import jax
import jax.numpy as jnp
from jax.experimental import pallas as pl
from jax.experimental.pallas import tpu as pltpu

IGNORE_INDEX = -100
_LANES = 128


def _tpu_hw():
    """Best-effort (num_tensorcores, physical VMEM bytes) with safe fallbacks."""
    num_cores = 1
    vmem_bytes = 64 * 1024 * 1024
    try:
        info = pltpu.get_tpu_info()
        for name in ("vmem_capacity_bytes", "vmem_size_bytes", "vmem_bytes"):
            val = getattr(info, name, None)
            if val:
                vmem_bytes = int(val)
                break
        for name in ("num_cores", "core_count", "num_tensorcores",
                     "tensorcore_count", "cores_per_chip"):
            val = getattr(info, name, None)
            if val:
                num_cores = int(val)
                break
    except Exception:
        pass
    return num_cores, vmem_bytes


# ---------------------------------------------------------------------------
# Main kernel: aligned spatial extent (H*W % 128 == 0), class axis kept major.
# ---------------------------------------------------------------------------
def _ce_kernel_aligned(logits_ref, tgt_ref, psum_ref, acc_ref, *, C, tr, R, tpp):
    p = pl.program_id(0)   # partition (split across TensorCores on v7x)
    b = pl.program_id(1)   # batch
    s = pl.program_id(2)   # spatial row-tile within this partition

    @pl.when((b == 0) & (s == 0))
    def _init():
        acc_ref[...] = jnp.zeros_like(acc_ref)

    t = tgt_ref[0]                                           # (tr, 128) int32

    # Fused per-class loop: no (C, tr, 128) iota / exp / where temporaries.
    # Pass 1: running max over classes + gather of the target-class logit.
    # bf16 logits are upcast one (tr, 128) slab at a time (DMA stays bf16).
    # TODO(synk): for very large C switch to lax.fori_loop to bound code size.
    x0 = logits_ref[0, 0].astype(jnp.float32)                # (tr, 128)
    m = x0
    picked = jnp.where(t == 0, x0, jnp.zeros_like(x0))
    for c in range(1, C):
        xc = logits_ref[0, c].astype(jnp.float32)
        m = jnp.maximum(m, xc)
        picked = jnp.where(t == c, xc, picked)

    # Pass 2: sum of exp(x - m) over classes (exp goes to the EUP slot).
    se = jnp.exp(logits_ref[0, 0].astype(jnp.float32) - m)
    for c in range(1, C):
        se = se + jnp.exp(logits_ref[0, c].astype(jnp.float32) - m)
    lse = m + jnp.log(se)

    # Mask rows past the real spatial extent (ragged last row-tile / clamped
    # overflow tiles) and ignore_index targets.  Keep this a select, never a
    # multiply, so NaN/Inf from unspecified padded VMEM cannot propagate.
    tile_id = p * tpp + s
    rows = tile_id * tr + jax.lax.broadcasted_iota(jnp.int32, (tr, _LANES), 0)
    valid = (rows < R) & (t != IGNORE_INDEX)
    acc_ref[...] += jnp.where(valid, lse - picked, 0.0)

    @pl.when((b == pl.num_programs(1) - 1) & (s == pl.num_programs(2) - 1))
    def _finalize():
        # Single cross-sublane reduce; lane-dense (1, 1, 128) partial output.
        psum_ref[...] = jnp.sum(acc_ref[...], axis=0, keepdims=True)[None]


def _ce_aligned_call(x, t, *, num_cores, tile_budget, vmem_limit):
    """x: (N, C, R, 128) logits (input dtype), t: (N, R, 128) int32 targets."""
    N, C, R, _ = x.shape
    itemsize = jnp.dtype(x.dtype).itemsize
    # Dtype-aware sublane quantum: 8 for f32, 16 for bf16, 32 for 1-byte types.
    q = {4: 8, 2: 16, 1: 32}.get(itemsize, 8)
    tr_cap = max(q, tile_budget // (C * _LANES * itemsize))

    if R <= tr_cap:
        tr = R                                   # full extent: always legal
    else:
        tr = max(q, (tr_cap // q) * q)
    n_tiles = pl.cdiv(R, tr)

    # Split row tiles across TensorCores only on multi-core chips (v7x).
    P = 2 if (num_cores >= 2 and n_tiles >= 2) else 1
    if P == 2 and n_tiles % 2 != 0:
        # Prefer an even tile count so both TensorCores get equal work and the
        # clamped duplicate-DMA overflow steps disappear.
        for cand in range(tr - q, max(0, tr - 17 * q), -q):
            if cand >= q and pl.cdiv(R, cand) % 2 == 0:
                tr = cand
                n_tiles = pl.cdiv(R, cand)
                break
    tpp = pl.cdiv(n_tiles, P)                    # row tiles per partition
    need_clamp = (tpp * P != n_tiles)

    if need_clamp:
        def tile_idx(p, s):
            return jnp.minimum(p * tpp + s, n_tiles - 1)
    else:
        def tile_idx(p, s):
            return p * tpp + s

    kernel = functools.partial(_ce_kernel_aligned, C=C, tr=tr, R=R, tpp=tpp)
    return pl.pallas_call(
        kernel,
        out_shape=jax.ShapeDtypeStruct((P, 1, _LANES), jnp.float32),
        grid_spec=pltpu.PrefetchScalarGridSpec(
            num_scalar_prefetch=0,
            grid=(P, N, tpp),
            in_specs=[
                pl.BlockSpec((1, C, tr, _LANES),
                             lambda p, b, s: (b, 0, tile_idx(p, s), 0)),
                pl.BlockSpec((1, tr, _LANES),
                             lambda p, b, s: (b, tile_idx(p, s), 0)),
            ],
            out_specs=pl.BlockSpec((1, 1, _LANES), lambda p, b, s: (p, 0, 0)),
            scratch_shapes=[pltpu.VMEM((tr, _LANES), jnp.float32)],
        ),
        compiler_params=pltpu.CompilerParams(
            dimension_semantics=("parallel", "arbitrary", "arbitrary"),
            vmem_limit_bytes=vmem_limit,
        ),
    )(x, t)


# ---------------------------------------------------------------------------
# Fallback kernel: ragged spatial extent (H*W % 128 != 0).  Streams the flat
# (N, C, HW) logits with ragged last blocks (no HBM pad copy); classes sit on
# sublanes, so the class reductions are cheap cross-sublane reduces.
# ---------------------------------------------------------------------------
def _ce_kernel_flat(logits_ref, tgt_ref, psum_ref, acc_ref, *, C, T, HW):
    b = pl.program_id(0)
    s = pl.program_id(1)

    @pl.when((b == 0) & (s == 0))
    def _init():
        acc_ref[...] = jnp.zeros_like(acc_ref)

    x = logits_ref[0].astype(jnp.float32)                    # (C, T)
    t = tgt_ref[0]                                           # (1, T) int32

    m = jnp.max(x, axis=0, keepdims=True)                    # (1, T)
    lse = m + jnp.log(jnp.sum(jnp.exp(x - m), axis=0, keepdims=True))
    cls = jax.lax.broadcasted_iota(jnp.int32, (C, T), 0)
    picked = jnp.sum(jnp.where(cls == t, x, 0.0), axis=0, keepdims=True)

    # Flat pixel index mask handles the ragged last block; select, not multiply.
    pix = s * T + jax.lax.broadcasted_iota(jnp.int32, (1, T), 1)
    valid = (pix < HW) & (t != IGNORE_INDEX)
    acc_ref[...] += jnp.where(valid, lse - picked, 0.0)

    @pl.when((b == pl.num_programs(0) - 1) & (s == pl.num_programs(1) - 1))
    def _finalize():
        psum_ref[...] = acc_ref[...]


def _ce_flat_call(x, t, *, vmem_limit):
    """x: (N, C, HW) logits (input dtype), t: (N, 1, HW) int32 targets."""
    N, C, HW = x.shape
    # Modest tile: the fallback materialises (C, T)-sized f32 temporaries, so
    # cap C*T*4 at ~512 KiB.
    T_cap = max(_LANES, ((512 * 1024) // (C * 4)) // _LANES * _LANES)
    if HW >= _LANES:
        T = min(T_cap, (HW // _LANES) * _LANES)
    else:
        T = _LANES  # TODO(synk): single partial block when H*W < 128
    n_tiles = pl.cdiv(HW, T)

    kernel = functools.partial(_ce_kernel_flat, C=C, T=T, HW=HW)
    return pl.pallas_call(
        kernel,
        out_shape=jax.ShapeDtypeStruct((1, T), jnp.float32),
        grid_spec=pltpu.PrefetchScalarGridSpec(
            num_scalar_prefetch=0,
            grid=(N, n_tiles),
            in_specs=[
                pl.BlockSpec((1, C, T), lambda b, s: (b, 0, s)),
                pl.BlockSpec((1, 1, T), lambda b, s: (b, 0, s)),
            ],
            out_specs=pl.BlockSpec((1, T), lambda b, s: (0, 0)),
            scratch_shapes=[pltpu.VMEM((1, T), jnp.float32)],
        ),
        compiler_params=pltpu.CompilerParams(
            dimension_semantics=("arbitrary", "arbitrary"),
            vmem_limit_bytes=vmem_limit,
        ),
    )(x, t)


# ---------------------------------------------------------------------------
# Wrapper
# ---------------------------------------------------------------------------
def cross_entropy_loss(logits_nchw, targets_nhw):
    """nn.CrossEntropyLoss()(logits_nchw, targets_nhw) — mean reduction."""
    N, C, H, W = logits_nchw.shape
    HW = H * W

    num_cores, phys_vmem = _tpu_hw()
    if phys_vmem >= 96 * 1024 * 1024:        # v5e / v6e class (128 MiB VMEM)
        tile_budget = 6 * 1024 * 1024
        vmem_limit = 64 * 1024 * 1024
    else:                                    # v7x class (64 MiB VMEM per core)
        tile_budget = 4 * 1024 * 1024
        vmem_limit = 32 * 1024 * 1024

    t_flat = targets_nhw.reshape(N, HW).astype(jnp.int32)
    # Denominator from the tiny int32 targets in plain XLA: removes the
    # per-step count accumulator + extra output from the kernel.
    denom = jnp.sum((t_flat != IGNORE_INDEX).astype(jnp.float32))

    if HW % _LANES == 0:
        R = HW // _LANES
        x = logits_nchw.reshape(N, C, R, _LANES)         # free reshape
        t = t_flat.reshape(N, R, _LANES)
        psum = _ce_aligned_call(x, t, num_cores=num_cores,
                                tile_budget=tile_budget, vmem_limit=vmem_limit)
    else:
        # No jnp.pad of the logits (that would be a full HBM copy): stream the
        # flat array with ragged last blocks and mask by flat pixel index.
        x = logits_nchw.reshape(N, C, HW)                # free reshape
        t = t_flat.reshape(N, 1, HW)
        psum = _ce_flat_call(x, t, vmem_limit=vmem_limit)

    # Mean over valid targets (NaN if every target is ignore_index — same as
    # PyTorch's all-ignored behavior).
    return jnp.sum(psum) / denom


class CrossEntrypyLossPallas:
    """Mirror of the PyTorch module: forward(inputs, targets)."""

    def __call__(self, inputs, targets):
        return cross_entropy_loss(inputs["semantic_final"], targets)


def _reference_loss(logits_nchw, targets_nhw):
    """Pure-JAX reference: log-softmax gather, mean over non-ignored targets."""
    N, C, H, W = logits_nchw.shape
    x = jnp.transpose(logits_nchw, (0, 2, 3, 1)).reshape(-1, C).astype(jnp.float32)
    t = targets_nhw.reshape(-1)
    valid = t != IGNORE_INDEX
    logp = jax.nn.log_softmax(x, axis=-1)
    tc = jnp.clip(t, 0, C - 1)
    nll = -jnp.take_along_axis(logp, tc[:, None], axis=-1)[:, 0]
    return jnp.sum(jnp.where(valid, nll, 0.0)) / jnp.sum(valid.astype(jnp.float32))


if __name__ == "__main__":
    key = jax.random.PRNGKey(0)
    k1, k2, k3, k4 = jax.random.split(key, 4)

    model = CrossEntrypyLossPallas()

    # Case 1: lane-aligned spatial extent (H*W % 128 == 0), f32 logits.
    N, C, H, W = 2, 4, 16, 16
    logits = jax.random.normal(k1, (N, C, H, W), dtype=jnp.float32)
    targets = jax.random.randint(k2, (N, H, W), 0, C, dtype=jnp.int32)
    targets = targets.at[0, 0, :3].set(IGNORE_INDEX)   # exercise ignore_index
    loss = jax.block_until_ready(model({"semantic_final": logits}, targets))
    ref = _reference_loss(logits, targets)
    assert jnp.allclose(loss, ref, rtol=1e-5, atol=1e-5), (loss, ref)

    # Case 2: bf16 logits — DMA stays bf16, per-slab upcast inside the kernel.
    logits_bf16 = logits.astype(jnp.bfloat16)
    loss_bf16 = jax.block_until_ready(
        model({"semantic_final": logits_bf16}, targets))
    ref_bf16 = _reference_loss(logits_bf16, targets)
    assert jnp.allclose(loss_bf16, ref_bf16, rtol=1e-4, atol=1e-4), (
        loss_bf16, ref_bf16)

    # Case 3: ragged spatial extent (H*W % 128 != 0) -> no-pad flat kernel.
    Hr, Wr = 12, 12
    logits_r = jax.random.normal(k3, (N, C, Hr, Wr), dtype=jnp.float32)
    targets_r = jax.random.randint(k4, (N, Hr, Wr), 0, C, dtype=jnp.int32)
    targets_r = targets_r.at[1, 2, :5].set(IGNORE_INDEX)
    loss_r = jax.block_until_ready(
        model({"semantic_final": logits_r}, targets_r))
    ref_r = _reference_loss(logits_r, targets_r)
    assert jnp.allclose(loss_r, ref_r, rtol=1e-5, atol=1e-5), (loss_r, ref_r)

    print("KERNEL_OK")
</pallas_src>

<mosaic_0001>
module attributes {stable_mosaic.version = 11 : i64} {
  func.func @_ce_kernel_aligned(%arg0: i32, %arg1: i32, %arg2: i32, %arg3: memref<1x4x2x128xf32, #tpu.memory_space<vmem>>, %arg4: memref<1x2x128xi32, #tpu.memory_space<vmem>>, %arg5: memref<1x1x128xf32, #tpu.memory_space<vmem>>, %arg6: memref<2x128xf32, #tpu.memory_space<vmem>>) attributes {dimension_semantics = [#tpu.dimension_semantics<parallel>, #tpu.dimension_semantics<arbitrary>, #tpu.dimension_semantics<arbitrary>], iteration_bounds = array<i64: 1, 2, 1>, scalar_prefetch = 0 : i64, scratch_operands = 1 : i64, tpu.core_type = #tpu.core_type<tc>, window_params = [{transform_indices = @transform_0, window_bounds = array<i64: 1, 4, 2, 128>}, {transform_indices = @transform_1, window_bounds = array<i64: 1, 2, 128>}, {transform_indices = @transform_2, window_bounds = array<i64: 1, 1, 128>}]} {
    %c0_i32 = arith.constant 0 : i32
    %0 = arith.cmpi eq, %arg1, %c0_i32 : i32
    %c0_i32_0 = arith.constant 0 : i32
    %1 = arith.cmpi eq, %arg2, %c0_i32_0 : i32
    %2 = arith.andi %0, %1 : i1
    %3 = arith.extui %2 : i1 to i32
    %c0_i32_1 = arith.constant 0 : i32
    %4 = arith.cmpi ne, %3, %c0_i32_1 : i32
    scf.if %4 {
      %cst_45 = arith.constant 0.000000e+00 : f32
      %74 = vector.broadcast %cst_45 : f32 to vector<2x128xf32>
      %c0_46 = arith.constant 0 : index
      %c0_47 = arith.constant 0 : index
      %75 = vector.load %arg6[%c0_46, %c0_47] : memref<2x128xf32, #tpu.memory_space<vmem>>, vector<2x128xf32>
      tpu.vector_store %arg6[%c0_46, %c0_47], %74 {strides = array<i32>} : memref<2x128xf32, #tpu.memory_space<vmem>>, vector<2x128xf32>,
    } else {
    }
    %c0 = arith.constant 0 : index
    %c0_2 = arith.constant 0 : index
    %c0_3 = arith.constant 0 : index
    %5 = vector.load %arg4[%c0, %c0_2, %c0_3] : memref<1x2x128xi32, #tpu.memory_space<vmem>>, vector<1x2x128xi32>
    %6 = vector.shape_cast %5 : vector<1x2x128xi32> to vector<2x128xi32>
    %c0_4 = arith.constant 0 : index
    %c0_5 = arith.constant 0 : index
    %c0_6 = arith.constant 0 : index
    %c0_7 = arith.constant 0 : index
    %7 = vector.load %arg3[%c0_4, %c0_5, %c0_6, %c0_7] : memref<1x4x2x128xf32, #tpu.memory_space<vmem>>, vector<1x1x2x128xf32>
    %8 = vector.shape_cast %7 : vector<1x1x2x128xf32> to vector<2x128xf32>
    %c0_i32_8 = arith.constant 0 : i32
    %9 = vector.broadcast %c0_i32_8 : i32 to vector<2x128xi32>
    %10 = arith.cmpi eq, %6, %9 : vector<2x128xi32>
    %cst = arith.constant 0.000000e+00 : f32
    %11 = vector.broadcast %cst : f32 to vector<2x128xf32>
    %12 = arith.select %10, %8, %11 : vector<2x128xi1>, vector<2x128xf32>
    %c0_9 = arith.constant 0 : index
    %c1 = arith.constant 1 : index
    %c0_10 = arith.constant 0 : index
    %c0_11 = arith.constant 0 : index
    %13 = vector.load %arg3[%c0_9, %c1, %c0_10, %c0_11] : memref<1x4x2x128xf32, #tpu.memory_space<vmem>>, vector<1x1x2x128xf32>
    %14 = vector.shape_cast %13 : vector<1x1x2x128xf32> to vector<2x128xf32>
    %15 = arith.maximumf %8, %14 : vector<2x128xf32>
    %c1_i32 = arith.constant 1 : i32
    %16 = vector.broadcast %c1_i32 : i32 to vector<2x128xi32>
    %17 = arith.cmpi eq, %6, %16 : vector<2x128xi32>
    %18 = arith.select %17, %14, %12 : vector<2x128xi1>, vector<2x128xf32>
    %c0_12 = arith.constant 0 : index
    %c2 = arith.constant 2 : index
    %c0_13 = arith.constant 0 : index
    %c0_14 = arith.constant 0 : index
    %19 = vector.load %arg3[%c0_12, %c2, %c0_13, %c0_14] : memref<1x4x2x128xf32, #tpu.memory_space<vmem>>, vector<1x1x2x128xf32>
    %20 = vector.shape_cast %19 : vector<1x1x2x128xf32> to vector<2x128xf32>
    %21 = arith.maximumf %15, %20 : vector<2x128xf32>
    %c2_i32 = arith.constant 2 : i32
    %22 = vector.broadcast %c2_i32 : i32 to vector<2x128xi32>
    %23 = arith.cmpi eq, %6, %22 : vector<2x128xi32>
    %24 = arith.select %23, %20, %18 : vector<2x128xi1>, vector<2x128xf32>
    %c0_15 = arith.constant 0 : index
    %c3 = arith.constant 3 : index
    %c0_16 = arith.constant 0 : index
    %c0_17 = arith.constant 0 : index
    %25 = vector.load %arg3[%c0_15, %c3, %c0_16, %c0_17] : memref<1x4x2x128xf32, #tpu.memory_space<vmem>>, vector<1x1x2x128xf32>
    %26 = vector.shape_cast %25 : vector<1x1x2x128xf32> to vector<2x128xf32>
    %27 = arith.maximumf %21, %26 : vector<2x128xf32>
    %c3_i32 = arith.constant 3 : i32
    %28 = vector.broadcast %c3_i32 : i32 to vector<2x128xi32>
    %29 = arith.cmpi eq, %6, %28 : vector<2x128xi32>
    %30 = arith.select %29, %26, %24 : vector<2x128xi1>, vector<2x128xf32>
    %c0_18 = arith.constant 0 : index
    %c0_19 = arith.constant 0 : index
    %c0_20 = arith.constant 0 : index
    %c0_21 = arith.constant 0 : index
    %31 = vector.load %arg3[%c0_18, %c0_19, %c0_20, %c0_21] : memref<1x4x2x128xf32, #tpu.memory_space<vmem>>, vector<1x1x2x128xf32>
    %32 = vector.shape_cast %31 : vector<1x1x2x128xf32> to vector<2x128xf32>
    %33 = arith.subf %32, %27 : vector<2x128xf32>
    %34 = math.exp %33 : vector<2x128xf32>
    %c0_22 = arith.constant 0 : index
    %c1_23 = arith.constant 1 : index
    %c0_24 = arith.constant 0 : index
    %c0_25 = arith.constant 0 : index
    %35 = vector.load %arg3[%c0_22, %c1_23, %c0_24, %c0_25] : memref<1x4x2x128xf32, #tpu.memory_space<vmem>>, vector<1x1x2x128xf32>
    %36 = vector.shape_cast %35 : vector<1x1x2x128xf32> to vector<2x128xf32>
    %37 = arith.subf %36, %27 : vector<2x128xf32>
    %38 = math.exp %37 : vector<2x128xf32>
    %39 = arith.addf %34, %38 : vector<2x128xf32>
    %c0_26 = arith.constant 0 : index
    %c2_27 = arith.constant 2 : index
    %c0_28 = arith.constant 0 : index
    %c0_29 = arith.constant 0 : index
    %40 = vector.load %arg3[%c0_26, %c2_27, %c0_28, %c0_29] : memref<1x4x2x128xf32, #tpu.memory_space<vmem>>, vector<1x1x2x128xf32>
    %41 = vector.shape_cast %40 : vector<1x1x2x128xf32> to vector<2x128xf32>
    %42 = arith.subf %41, %27 : vector<2x128xf32>
    %43 = math.exp %42 : vector<2x128xf32>
    %44 = arith.addf %39, %43 : vector<2x128xf32>
    %c0_30 = arith.constant 0 : index
    %c3_31 = arith.constant 3 : index
    %c0_32 = arith.constant 0 : index
    %c0_33 = arith.constant 0 : index
    %45 = vector.load %arg3[%c0_30, %c3_31, %c0_32, %c0_33] : memref<1x4x2x128xf32, #tpu.memory_space<vmem>>, vector<1x1x2x128xf32>
    %46 = vector.shape_cast %45 : vector<1x1x2x128xf32> to vector<2x128xf32>
    %47 = arith.subf %46, %27 : vector<2x128xf32>
    %48 = math.exp %47 : vector<2x128xf32>
    %49 = arith.addf %44, %48 : vector<2x128xf32>
    %50 = math.log %49 : vector<2x128xf32>
    %51 = arith.addf %27, %50 : vector<2x128xf32>
    %c1_i32_34 = arith.constant 1 : i32
    %52 = arith.muli %arg0, %c1_i32_34 : i32
    %53 = arith.addi %52, %arg2 : i32
    %c2_i32_35 = arith.constant 2 : i32
    %54 = arith.muli %53, %c2_i32_35 : i32
    %55 = tpu.iota {dimensions = array<i32: 0>} : vector<2x128xi32>
    %56 = vector.broadcast %54 : i32 to vector<2x128xi32>
    %57 = arith.addi %56, %55 : vector<2x128xi32>
    %c2_i32_36 = arith.constant 2 : i32
    %58 = vector.broadcast %c2_i32_36 : i32 to vector<2x128xi32>
    %59 = arith.cmpi slt, %57, %58 : vector<2x128xi32>
    %c-100_i32 = arith.constant -100 : i32
    %60 = vector.broadcast %c-100_i32 : i32 to vector<2x128xi32>
    %61 = arith.cmpi ne, %6, %60 : vector<2x128xi32>
    %62 = arith.andi %59, %61 : vector<2x128xi1>
    %c0_37 = arith.constant 0 : index
    %c0_38 = arith.constant 0 : index
    %63 = vector.load %arg6[%c0_37, %c0_38] : memref<2x128xf32, #tpu.memory_space<vmem>>, vector<2x128xf32>
    %64 = arith.subf %51, %30 : vector<2x128xf32>
    %cst_39 = arith.constant 0.000000e+00 : f32
    %65 = vector.broadcast %cst_39 : f32 to vector<2x128xf32>
    %66 = arith.select %62, %64, %65 : vector<2x128xi1>, vector<2x128xf32>
    %67 = arith.addf %63, %66 : vector<2x128xf32>
    %c0_40 = arith.constant 0 : index
    %c0_41 = arith.constant 0 : index
    %68 = vector.load %arg6[%c0_40, %c0_41] : memref<2x128xf32, #tpu.memory_space<vmem>>, vector<2x128xf32>
    tpu.vector_store %arg6[%c0_40, %c0_41], %67 {strides = array<i32>} : memref<2x128xf32, #tpu.memory_space<vmem>>, vector<2x128xf32>,
    %c1_i32_42 = arith.constant 1 : i32
    %69 = arith.cmpi eq, %arg1, %c1_i32_42 : i32
    %c0_i32_43 = arith.constant 0 : i32
    %70 = arith.cmpi eq, %arg2, %c0_i32_43 : i32
    %71 = arith.andi %69, %70 : i1
    %72 = arith.extui %71 : i1 to i32
    %c0_i32_44 = arith.constant 0 : i32
    %73 = arith.cmpi ne, %72, %c0_i32_44 : i32
    scf.if %73 {
      %c0_45 = arith.constant 0 : index
      %c0_46 = arith.constant 0 : index
      %74 = vector.load %arg6[%c0_45, %c0_46] : memref<2x128xf32, #tpu.memory_space<vmem>>, vector<2x128xf32>
      %cst_47 = arith.constant dense<0.000000e+00> : vector<128xf32>
      %75 = vector.multi_reduction <add>, %74, %cst_47 [0] : vector<2x128xf32> to vector<128xf32>
      %76 = vector.shape_cast %75 : vector<128xf32> to vector<1x128xf32>
      %77 = vector.shape_cast %76 : vector<1x128xf32> to vector<1x1x128xf32>
      %c0_48 = arith.constant 0 : index
      %c0_49 = arith.constant 0 : index
      %c0_50 = arith.constant 0 : index
      %78 = vector.load %arg5[%c0_48, %c0_49, %c0_50] : memref<1x1x128xf32, #tpu.memory_space<vmem>>, vector<1x1x128xf32>
      tpu.vector_store %arg5[%c0_48, %c0_49, %c0_50], %77 {strides = array<i32>} : memref<1x1x128xf32, #tpu.memory_space<vmem>>, vector<1x1x128xf32>,
    } else {
    }
    return
  }
  func.func @transform_0(%arg0: i32, %arg1: i32, %arg2: i32) -> (i32, i32, i32, i32) {
    %c1_i32 = arith.constant 1 : i32
    %0 = arith.muli %arg0, %c1_i32 : i32
    %1 = arith.addi %0, %arg2 : i32
    %c0_i32 = arith.constant 0 : i32
    %c0_i32_0 = arith.constant 0 : i32
    %c0_i32_1 = arith.constant 0 : i32
    return %arg1, %c0_i32, %1, %c0_i32_0 : i32, i32, i32, i32
  }
  func.func @transform_1(%arg0: i32, %arg1: i32, %arg2: i32) -> (i32, i32, i32) {
    %c1_i32 = arith.constant 1 : i32
    %0 = arith.muli %arg0, %c1_i32 : i32
    %1 = arith.addi %0, %arg2 : i32
    %c0_i32 = arith.constant 0 : i32
    %c0_i32_0 = arith.constant 0 : i32
    return %arg1, %1, %c0_i32 : i32, i32, i32
  }
  func.func @transform_2(%arg0: i32, %arg1: i32, %arg2: i32) -> (i32, i32, i32) {
    %c0_i32 = arith.constant 0 : i32
    %c0_i32_0 = arith.constant 0 : i32
    %c0_i32_1 = arith.constant 0 : i32
    return %arg0, %c0_i32, %c0_i32_0 : i32, i32, i32
  }
}

</mosaic_0001>

<llo_original>
// kernel: tpu_custom_call.1
$region0: #{tpu_custom_call.1}
  #allocation0 [shape = 'u32[]', space=smem, size = 0x4, offset = 0x4, fixed_abs, tag = 'smem constant byte address 0x4 - core index']
  #allocation1 [shape = 'u32[144,128]{1,0:T(1,128)}', space=vmem, size = 0x12000, scoped, tag = 'internal scratch']
  #allocation2 [shape = 'f32[2,128]{1,0:T(2,128)}', space=vmem, size = 0x400, scoped, tag = 'scratch operand']
  %s0 = inlined_call_operand.hbm [shape: f32[2,4,2,128], index: 0, kind: input, shape index: {}]
  %s1 = inlined_call_operand.hbm [shape: s32[2,2,128], index: 1, kind: input, shape index: {}]
  %s2 = inlined_call_operand.hbm [shape: f32[1,1,128], index: 2, kind: output, shape index: {}]
  %s3 = sld [smem:[#allocation0]]
  $region57: #{tpu_custom_call.1} parent=0
    _
  %s5 = ssub.s32 1, %s3
  %s6 = scalar_select 0, %s5, %s3
  $region1: #{tpu_custom_call.1} parent=0
    #allocation3 [shape = 'u8[8192]{0}', space=vmem, size = 0x2000, scoped, tag = 'input window, operand 0']
    #allocation4 [shape = 's32[2]{0}', space=sflag, size = 0x8, scoped, tag = 'scoped memory for tpu_custom_call.1']
    #allocation5 [shape = 's32[2]{0}', space=sflag, size = 0x8, scoped, tag = 'scoped memory for tpu_custom_call.1']
    #allocation6 [shape = 'u8[2048]{0}', space=vmem, size = 0x800, scoped, tag = 'input window, operand 1']
    #allocation7 [shape = 's32[2]{0}', space=sflag, size = 0x8, scoped, tag = 'scoped memory for tpu_custom_call.1']
    #allocation8 [shape = 'u8[512]{0}', space=vmem, size = 0x400, scoped, tag = 'output window, operand 0, single buffered']
    %7 = vsyncpa [#allocation4], 0
    %s8 = scalar_lea.sflag [#allocation4], 1
    %9 = vsyncpa %s8, 0
    %10 = vsyncpa [#allocation7], 0
    %s11 = scalar_lea.sflag [#allocation7], 1
    %12 = vsyncpa %s11, 0
    %13 = vsyncpa [#allocation5], 0
    loop: start=0, step=1, limit=4
    $region2: #{tpu_custom_call.1} parent=1 // loop_pre_header
      _
    $region3: #{tpu_custom_call.1} parent=1 // loop_header
      %s15 = sphi 0, %s19
      %p16 = scmp.ge.s32.totalorder %s15, 4
      %s22 = sphi 0, %s41
      %s23 = sphi 0, %s37
      %s24 = sphi 0, %s33
      %s25 = sphi 0, %s22
      %s26 = sphi 0, %s23
      %s27 = sphi 0, %s24
      %s28 = sphi 0, %s25
      %s29 = sphi 0, %s26
      %s30 = sphi 0, %s27
      %s48 = sphi 0, %s50
      %s51 = sphi 0, %s48
      %s52 = sphi 0, %s51
      %s68 = sphi 0, %s52
      %s78 = sphi 0, %s80
      %s81 = sphi 0, %s78
      %s82 = sphi 0, %s81
      %s98 = sphi 0, %s82
      %s104 = sphi 0, %s106
      %s107 = sphi 0, %s104
      %s108 = sphi 0, %s107
      %s124 = sphi 0, %s108
    $region4: #{tpu_custom_call.1} parent=1 // loop_header_branch
      %18 = sbr.rel (%p16) target = $region8
    $region5: #{tpu_custom_call.1} parent=1 // loop_body
      %s20 = ssub.s32 %s15, 1
      %s21 = ssub.s32 %s15, 2
      %s31 = sadd.s32 1, %s24
      %p32 = scmp.ge.s32.totalorder %s31, 1
      %s33 = scalar_select %p32, 0, %s31
      %s34 = sadd.s32 1, %s23
      %s35 = scalar_select %p32, %s34, %s23
      %p36 = scmp.ge.s32.totalorder %s35, 2
      %s37 = scalar_select %p36, 0, %s35
      %s38 = sadd.s32 1, %s22
      %s39 = scalar_select %p36, %s38, %s22
      %p40 = scmp.ge.s32.totalorder %s39, 1
      %s41 = scalar_select %p40, 0, %s39
      %s42 = sadd.s32 %s22, %s24
      %s43 = sadd.s32 %s41, %s33
      %s44 = ssub.s32 %s23, %s37
      %s45 = ssub.s32 %s42, %s43
      %s46 = sor.u32 %s44, %s45
      %p47 = scmp.eq.s32.totalorder %s46, 0
      %s49 = sadd.s32 %s48, 1
      %s50 = scalar_select %p47, %s48, %s49
      %p53 = pneg %p47
      %p54 = scmp.eq.s32.totalorder %s15, 1
      %p55 = por %p53, %p54
      %p56 = scmp.ne.s32.totalorder %s48, %s51
      %p57 = scmp.eq.s32.totalorder %s15, 0
      %p58 = por %p56, %p57
      %p59 = scmp.ne.s32.totalorder %s48, %s51
      %p60 = scmp.eq.s32.totalorder %s20, 1
      %p61 = por %p59, %p60
      %p62 = scmp.ne.s32.totalorder %s51, %s52
      %p63 = scmp.eq.s32.totalorder %s20, 0
      %p64 = por %p62, %p63
      %p65 = scmp.ne.s32.totalorder %s51, %s52
      %p66 = scmp.eq.s32.totalorder %s21, 1
      %p67 = por %p65, %p66
      %p69 = scmp.ne.s32.totalorder %s52, %s68
      %p70 = scmp.eq.s32.totalorder %s21, 0
      %p71 = por %p69, %p70
      %s72 = sadd.s32 %s22, %s24
      %s73 = sadd.s32 %s41, %s33
      %s74 = ssub.s32 %s23, %s37
      %s75 = ssub.s32 %s72, %s73
      %s76 = sor.u32 %s74, %s75
      %p77 = scmp.eq.s32.totalorder %s76, 0
      %s79 = sadd.s32 %s78, 1
      %s80 = scalar_select %p77, %s78, %s79
      %p83 = pneg %p77
      %p84 = scmp.eq.s32.totalorder %s15, 1
      %p85 = por %p83, %p84
      %p86 = scmp.ne.s32.totalorder %s78, %s81
      %p87 = scmp.eq.s32.totalorder %s15, 0
      %p88 = por %p86, %p87
      %p89 = scmp.ne.s32.totalorder %s78, %s81
      %p90 = scmp.eq.s32.totalorder %s20, 1
      %p91 = por %p89, %p90
      %p92 = scmp.ne.s32.totalorder %s81, %s82
      %p93 = scmp.eq.s32.totalorder %s20, 0
      %p94 = por %p92, %p93
      %p95 = scmp.ne.s32.totalorder %s81, %s82
      %p96 = scmp.eq.s32.totalorder %s21, 1
      %p97 = por %p95, %p96
      %p99 = scmp.ne.s32.totalorder %s82, %s98
      %p100 = scmp.eq.s32.totalorder %s21, 0
      %p101 = por %p99, %p100
      %s102 = ssub.s32 %s22, %s41
      %p103 = scmp.eq.s32.totalorder %s102, 0
      %s105 = sadd.s32 %s104, 1
      %s106 = scalar_select %p103, %s104, %s105
      %p109 = pneg %p103
      %p110 = scmp.eq.s32.totalorder %s15, 1
      %p111 = por %p109, %p110
      %p112 = scmp.ne.s32.totalorder %s104, %s107
      %p113 = scmp.eq.s32.totalorder %s15, 0
      %p114 = por %p112, %p113
      %p115 = scmp.ne.s32.totalorder %s104, %s107
      %p116 = scmp.eq.s32.totalorder %s20, 1
      %p117 = por %p115, %p116
      %p118 = scmp.ne.s32.totalorder %s107, %s108
      %p119 = scmp.eq.s32.totalorder %s20, 0
      %p120 = por %p118, %p119
      %p121 = scmp.ne.s32.totalorder %s107, %s108
      %p122 = scmp.eq.s32.totalorder %s21, 1
      %p123 = por %p121, %p122
      %p125 = scmp.ne.s32.totalorder %s108, %s124
      %p126 = scmp.eq.s32.totalorder %s21, 0
      %p127 = por %p125, %p126
      %p128 = scmp.le.s32.totalorder 1, %s15
      %p129 = scmp.lt.s32.totalorder %s15, 3
      %p130 = pnand %p128, %p129
      %p131 = pneg %p130
      // Predicated region
      $region9: #{tpu_custom_call.1} parent=5 // pred_check
        _
      $region10: #{tpu_custom_call.1} parent=5 // pred_check_branch
        %133 = sbr.rel (%p130) target = $region12
      $region11: #{tpu_custom_call.1} parent=5 // pred_region
        %s134 = ssub.s32 %s15, 1
      $region12: #{tpu_custom_call.1} parent=5 // pred_fallthru
        _
      %p135 = scmp.lt.s32.totalorder %s15, 2
      // Predicated region
      $region13: #{tpu_custom_call.1} parent=5 // pred_check
        %p136 = pneg %p135
      $region14: #{tpu_custom_call.1} parent=5 // pred_check_branch
        %138 = sbr.rel (%p136) target = $region16
      $region15: #{tpu_custom_call.1} parent=5 // pred_region
        // Predicated region
        $region17: #{tpu_custom_call.1} parent=15 // pred_check
          %p139 = pneg %p58
        $region18: #{tpu_custom_call.1} parent=15 // pred_check_branch
          %141 = sbr.rel (%p139) target = $region20
        $region19: #{tpu_custom_call.1} parent=15 // pred_region
          %s142 = sand.u32 %s48, 1
          %s143 = scalar_lea.sflag [#allocation4], %s142
          %s144 = sand.u32 %s48, 1
          %s145 = smul.addr %s144, 8
          %s146 = scalar_lea.vmem [#allocation3], %s145
          %s147 = sadd.s32 %s22, %s24
          %s149 = ssub.s32 128, 128
          %150 = vsyncadd %s143, %s149
          %s151 = smul.addr %s23, 4
          %s152 = sadd.s32 %s147, %s151
          %s153 = smul.addr %s152, 32
          %s154 = scalar_lea.hbm %s0, %s153
          %s155 = sshll.u32 %s146, 4
          %s156 = int_to_ptr.vmem [resolvable:$true] %s155
          %161 = dma.hbm_to_vmem [thread:$0]  %s154, 128, %s156, %s143, 32, 32, 2
        $region20: #{tpu_custom_call.1} parent=15 // pred_fallthru
          _
        // Predicated region
        $region21: #{tpu_custom_call.1} parent=15 // pred_check
          %p162 = pneg %p88
        $region22: #{tpu_custom_call.1} parent=15 // pred_check_branch
          %164 = sbr.rel (%p162) target = $region24
        $region23: #{tpu_custom_call.1} parent=15 // pred_region
          %s165 = sand.u32 %s78, 1
          %s166 = scalar_lea.sflag [#allocation7], %s165
          %s167 = sand.u32 %s78, 1
          %s168 = smul.addr %s167, 2
          %s169 = scalar_lea.vmem [#allocation6], %s168
          %s170 = sadd.s32 %s22, %s24
          %s172 = ssub.s32 32, 32
          %173 = vsyncadd %s166, %s172
          %s174 = sadd.s32 %s170, %s23
          %s175 = smul.addr %s174, 32
          %s176 = scalar_lea.hbm %s1, %s175
          %s178 = sshll.u32 %s169, 4
          %s179 = int_to_ptr.vmem [resolvable:$true] %s178
          %181 = dma.hbm_to_vmem [thread:$0]  %s176, 32, %s179, %s166
        $region24: #{tpu_custom_call.1} parent=15 // pred_fallthru
          _
      $region16: #{tpu_custom_call.1} parent=5 // pred_fallthru
        _
      %p182 = scmp.le.s32.totalorder 1, %s15
      %p183 = scmp.lt.s32.totalorder %s15, 3
      %p184 = pnand %p182, %p183
      %p185 = pneg %p184
      // Predicated region
      $region25: #{tpu_custom_call.1} parent=5 // pred_check
        _
      $region26: #{tpu_custom_call.1} parent=5 // pred_check_branch
        %187 = sbr.rel (%p184) target = $region28
      $region27: #{tpu_custom_call.1} parent=5 // pred_region
        %s188 = ssub.s32 %s15, 1
        %s189 = sand.u32 %s51, 1
        %s190 = scalar_lea.sflag [#allocation4], %s189
        %s191 = sand.u32 %s51, 1
        %s192 = smul.addr %s191, 8
        %s193 = scalar_lea.vmem [#allocation3], %s192
        // Predicated region
        $region29: #{tpu_custom_call.1} parent=27 // pred_check
          %p194 = pneg %p64
        $region30: #{tpu_custom_call.1} parent=27 // pred_check_branch
          %196 = sbr.rel (%p194) target = $region32
        $region31: #{tpu_custom_call.1} parent=27 // pred_region
          %197 = dma.done %s190, 128
        $region32: #{tpu_custom_call.1} parent=27 // pred_fallthru
          _
        %s198 = sand.u32 %s81, 1
        %s199 = scalar_lea.sflag [#allocation7], %s198
        %s200 = sand.u32 %s81, 1
        %s201 = smul.addr %s200, 2
        %s202 = scalar_lea.vmem [#allocation6], %s201
        // Predicated region
        $region33: #{tpu_custom_call.1} parent=27 // pred_check
          %p203 = pneg %p94
        $region34: #{tpu_custom_call.1} parent=27 // pred_check_branch
          %205 = sbr.rel (%p203) target = $region36
        $region35: #{tpu_custom_call.1} parent=27 // pred_region
          %206 = dma.done %s199, 32
        $region36: #{tpu_custom_call.1} parent=27 // pred_fallthru
          _
        %s207 = sand.u32 %s51, 1
        %s208 = scalar_lea.sflag [#allocation4], %s207
        %s209 = sand.u32 %s51, 1
        %s210 = smul.addr %s209, 8
        %s211 = scalar_lea.vmem [#allocation3], %s210
        %p212 = pneg %p64
        %p213 = pneg %p61
        %s214 = sand.u32 %s81, 1
        %s215 = scalar_lea.sflag [#allocation7], %s214
        %s216 = sand.u32 %s81, 1
        %s217 = smul.addr %s216, 2
        %s218 = scalar_lea.vmem [#allocation6], %s217
        %p219 = pneg %p94
        %p220 = pneg %p91
        %p221 = pneg %p120
        %p222 = pneg %p117
        %s223 = sadd.s32 %s25, %s27
        %s224 = sadd.s32 %s25, %s27
        %p225 = scmp.eq.s32.totalorder %s26, 0
        %p226 = scmp.eq.s32.totalorder %s27, 0
        %p227 = pnand %p225, %p226
        %p228 = pneg %p227
        // Predicated region
        $region37: #{tpu_custom_call.1} parent=27 // pred_check
          _
        $region38: #{tpu_custom_call.1} parent=27 // pred_check_branch
          %230 = sbr.rel (%p227) target = $region40
        $region39: #{tpu_custom_call.1} parent=27 // pred_region
          %231 = vst [vmem:[#allocation2] sm:$0x3] 0.0
        $region40: #{tpu_custom_call.1} parent=27 // pred_fallthru
          _
        %v232 = vld [vmem:[%s202] sm:$0x3]
        %v233 = vld [vmem:[%s193] sm:$0x3]
        %vm234 = vcmp.eq.s32.totalorder %v232, 0
        %v235 = vsel %vm234, %v233, 0.0
        %s236 = scalar_lea.vmem %s193, 2 [#allocation3]
        %v237 = vld [vmem:[%s236] sm:$0x3]
        %v238 = vmax.f32 %v233, %v237
        %vm239 = vcmp.eq.s32.totalorder %v232, 1
        %v240 = vsel %vm239, %v237, %v235
        %s241 = scalar_lea.vmem %s193, 4 [#allocation3]
        %v242 = vld [vmem:[%s241] sm:$0x3]
        %v243 = vmax.f32 %v238, %v242
        %vm244 = vcmp.eq.s32.totalorder %v232, 2
        %v245 = vsel %vm244, %v242, %v240
        %s246 = scalar_lea.vmem %s193, 6 [#allocation3]
        %v247 = vld [vmem:[%s246] sm:$0x3]
        %v248 = vmax.f32 %v243, %v247
        %vm249 = vcmp.eq.s32.totalorder %v232, 3
        %v250 = vsel %vm249, %v247, %v245
        %v251 = vsub.f32 %v233, %v248
        %v252 = vmul.f32 %v251, 1.442695
        %v253 = vpow.pop %v252
        %v254 = vsub.f32 %v237, %v248
        %v255 = vmul.f32 %v254, 1.442695
        %v256 = vpow.pop %v255
        %v257 = vadd.f32 %v253, %v256
        %v258 = vsub.f32 %v242, %v248
        %v259 = vmul.f32 %v258, 1.442695
        %v260 = vpow.pop %v259
        %v261 = vadd.f32 %v257, %v260
        %v262 = vsub.f32 %v247, %v248
        %v263 = vmul.f32 %v262, 1.442695
        %v264 = vpow.pop %v263
        %v265 = vadd.f32 %v261, %v264
        %v266 = vlog2.pop %v265
        %v267 = vmul.f32 %v266, 0.6931472
        %v268 = vadd.f32 %v248, %v267
        %s269 = sadd.s32 %s25, %s27
        %s270 = smul.u32 %s269, 2
        %v271 = vlaneseq
        %v272 = vshrl.u32 %v271, 7
        %v273 = vstv %s270
        %v274 = vadd.s32 %v273, %v272
        %vm275 = vcmp.lt.s32.totalorder %v274, 2
        %vm276 = vcmp.ne.s32.totalorder %v232, 4294967196
        %vm277 = vmand %vm275, %vm276
        %v278 = vld [vmem:[#allocation2] sm:$0x3]
        %v279 = vsub.f32 %v268, %v250
        %v280 = vsel %vm277, %v279, 0.0
        %v281 = vadd.f32 %v278, %v280
        %282 = vst [vmem:[#allocation2] sm:$0x3] %v281
        %p283 = scmp.eq.s32.totalorder %s26, 1
        %p284 = pnand %p283, %p226
        %p285 = pneg %p284
        // Predicated region
        $region41: #{tpu_custom_call.1} parent=27 // pred_check
          _
        $region42: #{tpu_custom_call.1} parent=27 // pred_check_branch
          %287 = sbr.rel (%p284) target = $region44
        $region43: #{tpu_custom_call.1} parent=27 // pred_region
          %v288 = vld [vmem:[#allocation2] sm:$0x3]
          %vm289 = vcmask 1041408
          %v290 = vsel %vm289, %v288, 0.0
          %v291 = vrot.slane %v290, 4
          %v292 = vadd.f32 %v290, %v291
          %v293 = vrot.slane %v292, 2
          %v294 = vadd.f32 %v292, %v293
          %v295 = vrot.slane %v294, 1
          %v296 = vadd.f32 %v294, %v295
          %297 = vst [vmem:[#allocation8] sm:$0x1] %v296
        $region44: #{tpu_custom_call.1} parent=27 // pred_fallthru
          _
        // Predicated region
        $region45: #{tpu_custom_call.1} parent=27 // pred_check
          %p298 = pneg %p117
        $region46: #{tpu_custom_call.1} parent=27 // pred_check_branch
          %300 = sbr.rel (%p298) target = $region48
        $region47: #{tpu_custom_call.1} parent=27 // pred_region
          %s302 = ssub.s32 16, 16
          %303 = vsyncadd [#allocation5], %s302
          %s304 = smul.addr %s25, 16
          %s305 = scalar_lea.hbm %s2, %s304
          %s307 = sshll.u32 [#allocation8], 4
          %s308 = int_to_ptr.vmem [resolvable:$true] %s307
          %310 = dma.vmem_to_hbm [thread:$0]  %s308, 16, %s305, [#allocation5]
        $region48: #{tpu_custom_call.1} parent=27 // pred_fallthru
          _
        // Predicated region
        $region49: #{tpu_custom_call.1} parent=27 // pred_check
          %p311 = pneg %p117
        $region50: #{tpu_custom_call.1} parent=27 // pred_check_branch
          %313 = sbr.rel (%p311) target = $region52
        $region51: #{tpu_custom_call.1} parent=27 // pred_region
          %314 = dma.done [#allocation5], 16
        $region52: #{tpu_custom_call.1} parent=27 // pred_fallthru
          _
      $region28: #{tpu_custom_call.1} parent=5 // pred_fallthru
        _
      %p315 = scmp.le.s32.totalorder 2, %s15
      // Predicated region
      $region53: #{tpu_custom_call.1} parent=5 // pred_check
        %p316 = pneg %p315
      $region54: #{tpu_custom_call.1} parent=5 // pred_check_branch
        %318 = sbr.rel (%p316) target = $region56
      $region55: #{tpu_custom_call.1} parent=5 // pred_region
        %s319 = ssub.s32 %s15, 2
      $region56: #{tpu_custom_call.1} parent=5 // pred_fallthru
        _
    $region6: #{tpu_custom_call.1} parent=1 // loop_footer
      %s19 = sadd.s32 1, %s15
    $region7: #{tpu_custom_call.1} parent=1 // loop_footer_branch
      %14 = sbr.rel target = $region3
    $region8: #{tpu_custom_call.1} parent=1 // loop_exit
      _
    %320 = vsyncpa [#allocation4], 1
    %s321 = scalar_lea.sflag [#allocation4], 1
    %322 = vsyncpa %s321, 1
    %323 = vsyncpa [#allocation7], 1
    %s324 = scalar_lea.sflag [#allocation7], 1
    %325 = vsyncpa %s324, 1
    %326 = vsyncpa [#allocation5], 1
    %s327 = scalar_lea.sflag [#allocation5], 1
    %328 = vsyncpa %s327, 1

</llo_original>
